<compile_context>
chip_gen: v7x
topology: tpu7x:2x2x1
jax: 0.10.0
libtpu: 0.0.40
codegen_flags: <defaults>
</compile_context>

<pallas_src>
import jax
import jax.numpy as jnp
from jax.experimental import pallas as pl
from jax.experimental.pallas import tpu as pltpu


def _conv3x3_rows(a_bf, w_ref, s_dn, s_up):
    """3x3 conv on a lane-dense (H, W*C) slab as 3 banded (W*C, W*C) matmuls.

    Row taps kh=0/kh=2 use exact 0/1 shift matrices (each shifted row is a pure copy,
    so the bf16 round-trip is exact); column taps and column zero-padding are already
    folded into the banded weights w_ref[kh].  f32 accumulation on the MXU.
    """
    a_dn = jnp.dot(s_dn, a_bf, preferred_element_type=jnp.float32).astype(a_bf.dtype)
    a_up = jnp.dot(s_up, a_bf, preferred_element_type=jnp.float32).astype(a_bf.dtype)
    acc = jnp.dot(a_dn, w_ref[0], preferred_element_type=jnp.float32)
    acc = acc + jnp.dot(a_bf, w_ref[1], preferred_element_type=jnp.float32)
    acc = acc + jnp.dot(a_up, w_ref[2], preferred_element_type=jnp.float32)
    return acc                                             # (H, W*C) f32


def residual_block_kernel(x_ref, w1_ref, b1_ref, w2_ref, b2_ref, o_ref):
    # x_ref : (1, H, W*C)  f32  lane-dense input slab (pixel-major, channel-minor)
    # w1_ref: (3, W*C, W*C) bf16 banded conv1 weights (one matrix per row tap kh)
    # b1_ref: (1, W*C)     f32  conv1 bias tiled across W
    # w2_ref: (3, W*C, W*C) bf16 banded conv2 weights
    # b2_ref: (1, W*C)     f32
    # o_ref : (1, H, W*C)  f32  lane-dense output slab
    H, WC = x_ref.shape[1], x_ref.shape[2]

    x = x_ref[0]                                           # (H, WC) f32
    x_bf = x.astype(jnp.bfloat16)

    # Exact 0/1 row-shift matrices from 2-D iota (replace padded scratch / concat).
    rows = jax.lax.broadcasted_iota(jnp.int32, (H, H), 0)
    cols = jax.lax.broadcasted_iota(jnp.int32, (H, H), 1)
    s_dn = (rows == cols + 1).astype(jnp.bfloat16)         # (s_dn @ a)[i] = a[i-1], row 0 -> 0
    s_up = (rows + 1 == cols).astype(jnp.bfloat16)         # (s_up @ a)[i] = a[i+1], row H-1 -> 0

    # conv1 + bias + ReLU  (f32 elementwise path)
    y1 = jnp.maximum(_conv3x3_rows(x_bf, w1_ref, s_dn, s_up) + b1_ref[...], 0.0)

    # conv2; bias + identity folded into the accumulator, then ReLU.  Lane-dense store.
    acc2 = _conv3x3_rows(y1.astype(jnp.bfloat16), w2_ref, s_dn, s_up)
    o_ref[0] = jnp.maximum(acc2 + b2_ref[...] + x, 0.0)


def _banded_conv_weights(w_oihw, W):
    """Fold the kw taps and the column zero-padding of a 3x3 conv into 3 banded
    (W*Cin, W*Cout) matrices (one per row tap kh) acting on lane-dense row slabs."""
    Cout, Cin, KH, KW = w_oihw.shape
    assert (KH, KW) == (3, 3)
    w = jnp.transpose(w_oihw, (2, 3, 1, 0)).astype(jnp.float32)   # (kh, kw, Cin, Cout)
    mats = []
    for kh in range(3):
        m = jnp.zeros((W * Cin, W * Cout), jnp.float32)
        for kw in range(3):
            # S[j_src, j_dst] = 1  iff  j_src == j_dst + (kw - 1); boundary taps drop out,
            # which implements the column zero-padding for free.
            shift = jnp.eye(W, k=1 - kw, dtype=jnp.float32)
            m = m + jnp.kron(shift, w[kh, kw])
        mats.append(m)
    return jnp.stack(mats).astype(jnp.bfloat16)                    # (3, W*Cin, W*Cout)


def residual_block(x_nchw, w1_oihw, b1, w2_oihw, b2):
    """Forward pass of ResidualBlock (identity_downsample=None, stride=1)."""
    B, Cin, H, W = x_nchw.shape
    Cout = w1_oihw.shape[0]
    assert Cin == Cout, "identity path requires in_channels == out_channels"
    WC = W * Cout

    # NCHW -> lane-dense (B, H, W*C) slab, channel-minor (no spatial pre-padding needed).
    x_slab = jnp.transpose(x_nchw, (0, 2, 3, 1)).astype(jnp.float32).reshape(B, H, WC)
    w1 = _banded_conv_weights(w1_oihw, W)                  # (3, WC, WC) bf16
    w2 = _banded_conv_weights(w2_oihw, W)
    b1s = jnp.tile(b1.astype(jnp.float32), W)[None, :]     # (1, WC)
    b2s = jnp.tile(b2.astype(jnp.float32), W)[None, :]

    out_slab = pl.pallas_call(
        residual_block_kernel,
        out_shape=jax.ShapeDtypeStruct((B, H, WC), jnp.float32),
        grid=(B,),
        in_specs=[
            pl.BlockSpec((1, H, WC), lambda b: (b, 0, 0)),     # input slab (per image)
            pl.BlockSpec((3, WC, WC), lambda b: (0, 0, 0)),    # banded w1 (resident)
            pl.BlockSpec((1, WC), lambda b: (0, 0)),           # bias1 slab
            pl.BlockSpec((3, WC, WC), lambda b: (0, 0, 0)),    # banded w2 (resident)
            pl.BlockSpec((1, WC), lambda b: (0, 0)),           # bias2 slab
        ],
        out_specs=pl.BlockSpec((1, H, WC), lambda b: (b, 0, 0)),
        compiler_params=pltpu.CompilerParams(
            dimension_semantics=("parallel",)),                # megacore split over batch
    )(x_slab, w1, b1s, w2, b2s)

    # lane-dense slab -> NCHW
    return jnp.transpose(out_slab.reshape(B, H, W, Cout), (0, 3, 1, 2))


def reference_forward(x, w1, b1, w2, b2):
    """XLA reference mirroring the kernel's mixed precision: bf16 conv operands,
    f32 accumulation, f32 bias / ReLU / residual."""
    dn = ("NCHW", "OIHW", "NCHW")
    bf = jnp.bfloat16
    y = jax.lax.conv_general_dilated(x.astype(bf), w1.astype(bf), (1, 1),
                                     ((1, 1), (1, 1)), dimension_numbers=dn,
                                     preferred_element_type=jnp.float32)
    y = jnp.maximum(y + b1[None, :, None, None], 0.0)
    y = jax.lax.conv_general_dilated(y.astype(bf), w2.astype(bf), (1, 1),
                                     ((1, 1), (1, 1)), dimension_numbers=dn,
                                     preferred_element_type=jnp.float32)
    y = y + b2[None, :, None, None]
    return jnp.maximum(y + x, 0.0)


if __name__ == "__main__":
    B, C, H, W = 2, 8, 16, 16      # in_channels == out_channels == 8; W*C = 128 (lane-dense)
    key = jax.random.PRNGKey(0)
    kx, k1, k2, k3, k4 = jax.random.split(key, 5)

    x = jax.random.normal(kx, (B, C, H, W), jnp.float32)
    # PyTorch Conv2d weight shape: (out_channels, in_channels, 3, 3); deterministic init.
    scale = 1.0 / (C * 9) ** 0.5
    w1 = jax.random.uniform(k1, (C, C, 3, 3), jnp.float32, -scale, scale)
    b1 = jax.random.uniform(k2, (C,), jnp.float32, -scale, scale)
    w2 = jax.random.uniform(k3, (C, C, 3, 3), jnp.float32, -scale, scale)
    b2 = jax.random.uniform(k4, (C,), jnp.float32, -scale, scale)

    out = jax.block_until_ready(residual_block(x, w1, b1, w2, b2))

    ref = reference_forward(x, w1, b1, w2, b2)
    assert out.shape == ref.shape == (B, C, H, W)
    max_err = float(jnp.max(jnp.abs(out - ref)))
    assert jnp.allclose(out, ref, atol=5e-3, rtol=5e-3), f"mismatch vs reference, max_err={max_err}"

    print("KERNEL_OK")
</pallas_src>

<mosaic_0001>
module attributes {stable_mosaic.version = 11 : i64} {
  func.func @residual_block_kernel(%arg0: i32, %arg1: memref<1x16x128xf32, #tpu.memory_space<vmem>>, %arg2: memref<3x128x128xbf16, #tpu.memory_space<vmem>>, %arg3: memref<1x128xf32, #tpu.memory_space<vmem>>, %arg4: memref<3x128x128xbf16, #tpu.memory_space<vmem>>, %arg5: memref<1x128xf32, #tpu.memory_space<vmem>>, %arg6: memref<1x16x128xf32, #tpu.memory_space<vmem>>) attributes {dimension_semantics = [#tpu.dimension_semantics<parallel>], iteration_bounds = array<i64: 2>, scalar_prefetch = 0 : i64, scratch_operands = 0 : i64, tpu.core_type = #tpu.core_type<tc>, window_params = [{transform_indices = @transform_0, window_bounds = array<i64: 1, 16, 128>}, {pipeline_mode = #tpu.pipeline_mode<synchronous>, transform_indices = @transform_1, window_bounds = array<i64: 3, 128, 128>}, {pipeline_mode = #tpu.pipeline_mode<synchronous>, transform_indices = @transform_2, window_bounds = array<i64: 1, 128>}, {pipeline_mode = #tpu.pipeline_mode<synchronous>, transform_indices = @transform_3, window_bounds = array<i64: 3, 128, 128>}, {pipeline_mode = #tpu.pipeline_mode<synchronous>, transform_indices = @transform_4, window_bounds = array<i64: 1, 128>}, {transform_indices = @transform_5, window_bounds = array<i64: 1, 16, 128>}]} {
    %c0 = arith.constant 0 : index
    %c0_0 = arith.constant 0 : index
    %c0_1 = arith.constant 0 : index
    %0 = vector.load %arg1[%c0, %c0_0, %c0_1] : memref<1x16x128xf32, #tpu.memory_space<vmem>>, vector<1x16x128xf32>
    %1 = vector.shape_cast %0 : vector<1x16x128xf32> to vector<16x128xf32>
    %2 = arith.truncf %1 : vector<16x128xf32> to vector<16x128xbf16>
    %3 = tpu.iota {dimensions = array<i32: 0>} : vector<16x16xi32>
    %4 = tpu.iota {dimensions = array<i32: 1>} : vector<16x16xi32>
    %c1_i32 = arith.constant 1 : i32
    %5 = vector.broadcast %c1_i32 : i32 to vector<16x16xi32>
    %6 = arith.addi %4, %5 : vector<16x16xi32>
    %7 = arith.cmpi eq, %3, %6 : vector<16x16xi32>
    %8 = arith.extui %7 : vector<16x16xi1> to vector<16x16xi32>
    %9 = arith.sitofp %8 : vector<16x16xi32> to vector<16x16xf32>
    %10 = arith.truncf %9 : vector<16x16xf32> to vector<16x16xbf16>
    %c1_i32_2 = arith.constant 1 : i32
    %11 = vector.broadcast %c1_i32_2 : i32 to vector<16x16xi32>
    %12 = arith.addi %3, %11 : vector<16x16xi32>
    %13 = arith.cmpi eq, %12, %4 : vector<16x16xi32>
    %14 = arith.extui %13 : vector<16x16xi1> to vector<16x16xi32>
    %15 = arith.sitofp %14 : vector<16x16xi32> to vector<16x16xf32>
    %16 = arith.truncf %15 : vector<16x16xf32> to vector<16x16xbf16>
    %cst = arith.constant dense<0.000000e+00> : vector<16x128xf32>
    %17 = tpu.matmul %10, %2, %cst {dimension_numbers = #tpu.dot_dimension_numbers<[1], [0], [0], [1], [0, 0, 1, 1], [], []>} : vector<16x16xbf16>, vector<16x128xbf16>, vector<16x128xf32> -> vector<16x128xf32>
    %18 = arith.truncf %17 : vector<16x128xf32> to vector<16x128xbf16>
    %cst_3 = arith.constant dense<0.000000e+00> : vector<16x128xf32>
    %19 = tpu.matmul %16, %2, %cst_3 {dimension_numbers = #tpu.dot_dimension_numbers<[1], [0], [0], [1], [0, 0, 1, 1], [], []>} : vector<16x16xbf16>, vector<16x128xbf16>, vector<16x128xf32> -> vector<16x128xf32>
    %20 = arith.truncf %19 : vector<16x128xf32> to vector<16x128xbf16>
    %c0_4 = arith.constant 0 : index
    %c0_5 = arith.constant 0 : index
    %c0_6 = arith.constant 0 : index
    %21 = vector.load %arg2[%c0_4, %c0_5, %c0_6] : memref<3x128x128xbf16, #tpu.memory_space<vmem>>, vector<1x128x128xbf16>
    %22 = vector.shape_cast %21 : vector<1x128x128xbf16> to vector<128x128xbf16>
    %cst_7 = arith.constant dense<0.000000e+00> : vector<16x128xf32>
    %23 = tpu.matmul %18, %22, %cst_7 {dimension_numbers = #tpu.dot_dimension_numbers<[1], [0], [0], [1], [0, 0, 1, 1], [], []>} : vector<16x128xbf16>, vector<128x128xbf16>, vector<16x128xf32> -> vector<16x128xf32>
    %c1 = arith.constant 1 : index
    %c0_8 = arith.constant 0 : index
    %c0_9 = arith.constant 0 : index
    %24 = vector.load %arg2[%c1, %c0_8, %c0_9] : memref<3x128x128xbf16, #tpu.memory_space<vmem>>, vector<1x128x128xbf16>
    %25 = vector.shape_cast %24 : vector<1x128x128xbf16> to vector<128x128xbf16>
    %cst_10 = arith.constant dense<0.000000e+00> : vector<16x128xf32>
    %26 = tpu.matmul %2, %25, %cst_10 {dimension_numbers = #tpu.dot_dimension_numbers<[1], [0], [0], [1], [0, 0, 1, 1], [], []>} : vector<16x128xbf16>, vector<128x128xbf16>, vector<16x128xf32> -> vector<16x128xf32>
    %27 = arith.addf %23, %26 : vector<16x128xf32>
    %c2 = arith.constant 2 : index
    %c0_11 = arith.constant 0 : index
    %c0_12 = arith.constant 0 : index
    %28 = vector.load %arg2[%c2, %c0_11, %c0_12] : memref<3x128x128xbf16, #tpu.memory_space<vmem>>, vector<1x128x128xbf16>
    %29 = vector.shape_cast %28 : vector<1x128x128xbf16> to vector<128x128xbf16>
    %cst_13 = arith.constant dense<0.000000e+00> : vector<16x128xf32>
    %30 = tpu.matmul %20, %29, %cst_13 {dimension_numbers = #tpu.dot_dimension_numbers<[1], [0], [0], [1], [0, 0, 1, 1], [], []>} : vector<16x128xbf16>, vector<128x128xbf16>, vector<16x128xf32> -> vector<16x128xf32>
    %31 = arith.addf %27, %30 : vector<16x128xf32>
    %c0_14 = arith.constant 0 : index
    %c0_15 = arith.constant 0 : index
    %32 = vector.load %arg3[%c0_14, %c0_15] : memref<1x128xf32, #tpu.memory_space<vmem>>, vector<1x128xf32>
    %33 = vector.broadcast %32 : vector<1x128xf32> to vector<16x128xf32>
    %34 = arith.addf %31, %33 : vector<16x128xf32>
    %cst_16 = arith.constant 0.000000e+00 : f32
    %35 = vector.broadcast %cst_16 : f32 to vector<16x128xf32>
    %36 = arith.maximumf %34, %35 : vector<16x128xf32>
    %37 = arith.truncf %36 : vector<16x128xf32> to vector<16x128xbf16>
    %cst_17 = arith.constant dense<0.000000e+00> : vector<16x128xf32>
    %38 = tpu.matmul %10, %37, %cst_17 {dimension_numbers = #tpu.dot_dimension_numbers<[1], [0], [0], [1], [0, 0, 1, 1], [], []>} : vector<16x16xbf16>, vector<16x128xbf16>, vector<16x128xf32> -> vector<16x128xf32>
    %39 = arith.truncf %38 : vector<16x128xf32> to vector<16x128xbf16>
    %cst_18 = arith.constant dense<0.000000e+00> : vector<16x128xf32>
    %40 = tpu.matmul %16, %37, %cst_18 {dimension_numbers = #tpu.dot_dimension_numbers<[1], [0], [0], [1], [0, 0, 1, 1], [], []>} : vector<16x16xbf16>, vector<16x128xbf16>, vector<16x128xf32> -> vector<16x128xf32>
    %41 = arith.truncf %40 : vector<16x128xf32> to vector<16x128xbf16>
    %c0_19 = arith.constant 0 : index
    %c0_20 = arith.constant 0 : index
    %c0_21 = arith.constant 0 : index
    %42 = vector.load %arg4[%c0_19, %c0_20, %c0_21] : memref<3x128x128xbf16, #tpu.memory_space<vmem>>, vector<1x128x128xbf16>
    %43 = vector.shape_cast %42 : vector<1x128x128xbf16> to vector<128x128xbf16>
    %cst_22 = arith.constant dense<0.000000e+00> : vector<16x128xf32>
    %44 = tpu.matmul %39, %43, %cst_22 {dimension_numbers = #tpu.dot_dimension_numbers<[1], [0], [0], [1], [0, 0, 1, 1], [], []>} : vector<16x128xbf16>, vector<128x128xbf16>, vector<16x128xf32> -> vector<16x128xf32>
    %c1_23 = arith.constant 1 : index
    %c0_24 = arith.constant 0 : index
    %c0_25 = arith.constant 0 : index
    %45 = vector.load %arg4[%c1_23, %c0_24, %c0_25] : memref<3x128x128xbf16, #tpu.memory_space<vmem>>, vector<1x128x128xbf16>
    %46 = vector.shape_cast %45 : vector<1x128x128xbf16> to vector<128x128xbf16>
    %cst_26 = arith.constant dense<0.000000e+00> : vector<16x128xf32>
    %47 = tpu.matmul %37, %46, %cst_26 {dimension_numbers = #tpu.dot_dimension_numbers<[1], [0], [0], [1], [0, 0, 1, 1], [], []>} : vector<16x128xbf16>, vector<128x128xbf16>, vector<16x128xf32> -> vector<16x128xf32>
    %48 = arith.addf %44, %47 : vector<16x128xf32>
    %c2_27 = arith.constant 2 : index
    %c0_28 = arith.constant 0 : index
    %c0_29 = arith.constant 0 : index
    %49 = vector.load %arg4[%c2_27, %c0_28, %c0_29] : memref<3x128x128xbf16, #tpu.memory_space<vmem>>, vector<1x128x128xbf16>
    %50 = vector.shape_cast %49 : vector<1x128x128xbf16> to vector<128x128xbf16>
    %cst_30 = arith.constant dense<0.000000e+00> : vector<16x128xf32>
    %51 = tpu.matmul %41, %50, %cst_30 {dimension_numbers = #tpu.dot_dimension_numbers<[1], [0], [0], [1], [0, 0, 1, 1], [], []>} : vector<16x128xbf16>, vector<128x128xbf16>, vector<16x128xf32> -> vector<16x128xf32>
    %52 = arith.addf %48, %51 : vector<16x128xf32>
    %c0_31 = arith.constant 0 : index
    %c0_32 = arith.constant 0 : index
    %53 = vector.load %arg5[%c0_31, %c0_32] : memref<1x128xf32, #tpu.memory_space<vmem>>, vector<1x128xf32>
    %54 = vector.broadcast %53 : vector<1x128xf32> to vector<16x128xf32>
    %55 = arith.addf %52, %54 : vector<16x128xf32>
    %56 = arith.addf %55, %1 : vector<16x128xf32>
    %cst_33 = arith.constant 0.000000e+00 : f32
    %57 = vector.broadcast %cst_33 : f32 to vector<16x128xf32>
    %58 = arith.maximumf %56, %57 : vector<16x128xf32>
    %c0_34 = arith.constant 0 : index
    %c0_35 = arith.constant 0 : index
    %c0_36 = arith.constant 0 : index
    %59 = vector.load %arg6[%c0_34, %c0_35, %c0_36] : memref<1x16x128xf32, #tpu.memory_space<vmem>>, vector<1x16x128xf32>
    %60 = vector.shape_cast %59 : vector<1x16x128xf32> to vector<16x128xf32>
    %61 = vector.shape_cast %58 : vector<16x128xf32> to vector<1x16x128xf32>
    tpu.vector_store %arg6[%c0_34, %c0_35, %c0_36], %61 {strides = array<i32>} : memref<1x16x128xf32, #tpu.memory_space<vmem>>, vector<1x16x128xf32>,
    return
  }
  func.func @transform_0(%arg0: i32) -> (i32, i32, i32) {
    %c0_i32 = arith.constant 0 : i32
    %c0_i32_0 = arith.constant 0 : i32
    %c0_i32_1 = arith.constant 0 : i32
    return %arg0, %c0_i32, %c0_i32_0 : i32, i32, i32
  }
  func.func @transform_1(%arg0: i32) -> (i32, i32, i32) {
    %c0_i32 = arith.constant 0 : i32
    %c0_i32_0 = arith.constant 0 : i32
    %c0_i32_1 = arith.constant 0 : i32
    %c0_i32_2 = arith.constant 0 : i32
    return %c0_i32, %c0_i32_0, %c0_i32_1 : i32, i32, i32
  }
  func.func @transform_2(%arg0: i32) -> (i32, i32) {
    %c0_i32 = arith.constant 0 : i32
    %c0_i32_0 = arith.constant 0 : i32
    %c0_i32_1 = arith.constant 0 : i32
    return %c0_i32, %c0_i32_0 : i32, i32
  }
  func.func @transform_3(%arg0: i32) -> (i32, i32, i32) {
    %c0_i32 = arith.constant 0 : i32
    %c0_i32_0 = arith.constant 0 : i32
    %c0_i32_1 = arith.constant 0 : i32
    %c0_i32_2 = arith.constant 0 : i32
    return %c0_i32, %c0_i32_0, %c0_i32_1 : i32, i32, i32
  }
  func.func @transform_4(%arg0: i32) -> (i32, i32) {
    %c0_i32 = arith.constant 0 : i32
    %c0_i32_0 = arith.constant 0 : i32
    %c0_i32_1 = arith.constant 0 : i32
    return %c0_i32, %c0_i32_0 : i32, i32
  }
  func.func @transform_5(%arg0: i32) -> (i32, i32, i32) {
    %c0_i32 = arith.constant 0 : i32
    %c0_i32_0 = arith.constant 0 : i32
    %c0_i32_1 = arith.constant 0 : i32
    return %arg0, %c0_i32, %c0_i32_0 : i32, i32, i32
  }
}

</mosaic_0001>

<llo_original>
// kernel: tpu_custom_call.1
$region0: #{tpu_custom_call.1}
  #allocation0 [shape = 'u32[]', space=smem, size = 0x4, offset = 0x4, fixed_abs, tag = 'smem constant byte address 0x4 - core index']
  #allocation1 [shape = 'u32[144,128]{1,0:T(1,128)}', space=vmem, size = 0x12000, scoped, tag = 'internal scratch']
  %s0 = inlined_call_operand.hbm [shape: f32[2,16,128], index: 0, kind: input, shape index: {}]
  %s1 = inlined_call_operand.hbm [shape: bf16[3,128,128], index: 1, kind: input, shape index: {}]
  %s2 = inlined_call_operand.vmem [shape: f32[1,128], index: 2, kind: input, shape index: {}]
  %s3 = inlined_call_operand.hbm [shape: bf16[3,128,128], index: 3, kind: input, shape index: {}]
  %s4 = inlined_call_operand.vmem [shape: f32[1,128], index: 4, kind: input, shape index: {}]
  %s5 = inlined_call_operand.hbm [shape: f32[2,16,128], index: 5, kind: output, shape index: {}]
  %s6 = sld [smem:[#allocation0]]
  $region65: #{tpu_custom_call.1} parent=0
    _
  %s8 = ssub.s32 1, %s6
  %s9 = scalar_select 0, %s8, %s6
  $region1: #{tpu_custom_call.1} parent=0
    #allocation2 [shape = 'u8[16384]{0}', space=vmem, size = 0x4000, scoped, tag = 'input window, operand 0']
    #allocation3 [shape = 's32[2]{0}', space=sflag, size = 0x8, scoped, tag = 'scoped memory for tpu_custom_call.1']
    #allocation4 [shape = 's32[2]{0}', space=sflag, size = 0x8, scoped, tag = 'scoped memory for tpu_custom_call.1']
    #allocation5 [shape = 'u8[98304]{0}', space=vmem, size = 0x18000, scoped, tag = 'input window, operand 1, single buffered']
    #allocation6 [shape = 's32[1]{0}', space=sflag, size = 0x4, scoped, tag = 'scoped memory for tpu_custom_call.1']
    #allocation7 [shape = 'u8[98304]{0}', space=vmem, size = 0x18000, scoped, tag = 'input window, operand 3, single buffered']
    #allocation8 [shape = 'u8[16384]{0}', space=vmem, size = 0x4000, scoped, tag = 'output window, operand 0']
    %10 = vsyncpa [#allocation3], 0
    %s11 = scalar_lea.sflag [#allocation3], 1
    %12 = vsyncpa %s11, 0
    %13 = vsyncpa [#allocation6], 0
    %14 = vsyncpa [#allocation4], 0
    %s15 = scalar_lea.sflag [#allocation4], 1
    %16 = vsyncpa %s15, 0
    loop: start=0, step=1, limit=4
    $region2: #{tpu_custom_call.1} parent=1 // loop_pre_header
      _
    $region3: #{tpu_custom_call.1} parent=1 // loop_header
      %s18 = sphi 0, %s22
      %p19 = scmp.ge.s32.totalorder %s18, 4
      %s28 = sphi 0, %s30
      %s31 = sphi 0, %s28
      %s32 = sphi 0, %s31
      %s48 = sphi 0, %s32
      %s52 = sphi 0, %s52
      %s54 = sphi 0, %s52
      %s55 = sphi 0, %s54
      %s69 = sphi 0, %s55
      %s73 = sphi 0, %s73
      %s75 = sphi 0, %s73
      %s76 = sphi 0, %s75
      %s90 = sphi 0, %s76
      %s94 = sphi 0, %s94
      %s96 = sphi 0, %s94
      %s97 = sphi 0, %s96
      %s111 = sphi 0, %s97
      %s115 = sphi 0, %s115
      %s117 = sphi 0, %s115
      %s118 = sphi 0, %s117
      %s132 = sphi 0, %s118
      %s138 = sphi 0, %s140
      %s141 = sphi 0, %s138
      %s142 = sphi 0, %s141
      %s158 = sphi 0, %s142
    $region4: #{tpu_custom_call.1} parent=1 // loop_header_branch
      %21 = sbr.rel (%p19) target = $region8
    $region5: #{tpu_custom_call.1} parent=1 // loop_body
      %s23 = ssub.s32 %s18, 1
      %s24 = ssub.s32 %s18, 2
      %s25 = sadd.s32 %s18, 1
      %s26 = ssub.s32 %s18, %s25
      %p27 = scmp.eq.s32.totalorder %s26, 0
      %s29 = sadd.s32 %s28, 1
      %s30 = scalar_select %p27, %s28, %s29
      %p33 = pneg %p27
      %p34 = scmp.eq.s32.totalorder %s18, 1
      %p35 = por %p33, %p34
      %p36 = scmp.ne.s32.totalorder %s28, %s31
      %p37 = scmp.eq.s32.totalorder %s18, 0
      %p38 = por %p36, %p37
      %p39 = scmp.ne.s32.totalorder %s28, %s31
      %p40 = scmp.eq.s32.totalorder %s23, 1
      %p41 = por %p39, %p40
      %p42 = scmp.ne.s32.totalorder %s31, %s32
      %p43 = scmp.eq.s32.totalorder %s23, 0
      %p44 = por %p42, %p43
      %p45 = scmp.ne.s32.totalorder %s31, %s32
      %p46 = scmp.eq.s32.totalorder %s24, 1
      %p47 = por %p45, %p46
      %p49 = scmp.ne.s32.totalorder %s32, %s48
      %p50 = scmp.eq.s32.totalorder %s24, 0
      %p51 = por %p49, %p50
      %s53 = sadd.s32 %s52, 1
      %p56 = scmp.eq.s32.totalorder %s18, 1
      %p57 = scmp.ne.s32.totalorder %s52, %s54
      %p58 = scmp.eq.s32.totalorder %s18, 0
      %p59 = por %p57, %p58
      %p60 = scmp.ne.s32.totalorder %s52, %s54
      %p61 = scmp.eq.s32.totalorder %s23, 1
      %p62 = por %p60, %p61
      %p63 = scmp.ne.s32.totalorder %s54, %s55
      %p64 = scmp.eq.s32.totalorder %s23, 0
      %p65 = por %p63, %p64
      %p66 = scmp.ne.s32.totalorder %s54, %s55
      %p67 = scmp.eq.s32.totalorder %s24, 1
      %p68 = por %p66, %p67
      %p70 = scmp.ne.s32.totalorder %s55, %s69
      %p71 = scmp.eq.s32.totalorder %s24, 0
      %p72 = por %p70, %p71
      %s74 = sadd.s32 %s73, 1
      %p77 = scmp.eq.s32.totalorder %s18, 1
      %p78 = scmp.ne.s32.totalorder %s73, %s75
      %p79 = scmp.eq.s32.totalorder %s18, 0
      %p80 = por %p78, %p79
      %p81 = scmp.ne.s32.totalorder %s73, %s75
      %p82 = scmp.eq.s32.totalorder %s23, 1
      %p83 = por %p81, %p82
      %p84 = scmp.ne.s32.totalorder %s75, %s76
      %p85 = scmp.eq.s32.totalorder %s23, 0
      %p86 = por %p84, %p85
      %p87 = scmp.ne.s32.totalorder %s75, %s76
      %p88 = scmp.eq.s32.totalorder %s24, 1
      %p89 = por %p87, %p88
      %p91 = scmp.ne.s32.totalorder %s76, %s90
      %p92 = scmp.eq.s32.totalorder %s24, 0
      %p93 = por %p91, %p92
      %s95 = sadd.s32 %s94, 1
      %p98 = scmp.eq.s32.totalorder %s18, 1
      %p99 = scmp.ne.s32.totalorder %s94, %s96
      %p100 = scmp.eq.s32.totalorder %s18, 0
      %p101 = por %p99, %p100
      %p102 = scmp.ne.s32.totalorder %s94, %s96
      %p103 = scmp.eq.s32.totalorder %s23, 1
      %p104 = por %p102, %p103
      %p105 = scmp.ne.s32.totalorder %s96, %s97
      %p106 = scmp.eq.s32.totalorder %s23, 0
      %p107 = por %p105, %p106
      %p108 = scmp.ne.s32.totalorder %s96, %s97
      %p109 = scmp.eq.s32.totalorder %s24, 1
      %p110 = por %p108, %p109
      %p112 = scmp.ne.s32.totalorder %s97, %s111
      %p113 = scmp.eq.s32.totalorder %s24, 0
      %p114 = por %p112, %p113
      %s116 = sadd.s32 %s115, 1
      %p119 = scmp.eq.s32.totalorder %s18, 1
      %p120 = scmp.ne.s32.totalorder %s115, %s117
      %p121 = scmp.eq.s32.totalorder %s18, 0
      %p122 = por %p120, %p121
      %p123 = scmp.ne.s32.totalorder %s115, %s117
      %p124 = scmp.eq.s32.totalorder %s23, 1
      %p125 = por %p123, %p124
      %p126 = scmp.ne.s32.totalorder %s117, %s118
      %p127 = scmp.eq.s32.totalorder %s23, 0
      %p128 = por %p126, %p127
      %p129 = scmp.ne.s32.totalorder %s117, %s118
      %p130 = scmp.eq.s32.totalorder %s24, 1
      %p131 = por %p129, %p130
      %p133 = scmp.ne.s32.totalorder %s118, %s132
      %p134 = scmp.eq.s32.totalorder %s24, 0
      %p135 = por %p133, %p134
      %s136 = ssub.s32 %s18, %s25
      %p137 = scmp.eq.s32.totalorder %s136, 0
      %s139 = sadd.s32 %s138, 1
      %s140 = scalar_select %p137, %s138, %s139
      %p143 = pneg %p137
      %p144 = scmp.eq.s32.totalorder %s18, 1
      %p145 = por %p143, %p144
      %p146 = scmp.ne.s32.totalorder %s138, %s141
      %p147 = scmp.eq.s32.totalorder %s18, 0
      %p148 = por %p146, %p147
      %p149 = scmp.ne.s32.totalorder %s138, %s141
      %p150 = scmp.eq.s32.totalorder %s23, 1
      %p151 = por %p149, %p150
      %p152 = scmp.ne.s32.totalorder %s141, %s142
      %p153 = scmp.eq.s32.totalorder %s23, 0
      %p154 = por %p152, %p153
      %p155 = scmp.ne.s32.totalorder %s141, %s142
      %p156 = scmp.eq.s32.totalorder %s24, 1
      %p157 = por %p155, %p156
      %p159 = scmp.ne.s32.totalorder %s142, %s158
      %p160 = scmp.eq.s32.totalorder %s24, 0
      %p161 = por %p159, %p160
      %p162 = scmp.le.s32.totalorder 1, %s18
      %p163 = scmp.lt.s32.totalorder %s18, 3
      %p164 = pnand %p162, %p163
      %p165 = pneg %p164
      // Predicated region
      $region9: #{tpu_custom_call.1} parent=5 // pred_check
        _
      $region10: #{tpu_custom_call.1} parent=5 // pred_check_branch
        %167 = sbr.rel (%p164) target = $region12
      $region11: #{tpu_custom_call.1} parent=5 // pred_region
        %s168 = ssub.s32 %s18, 1
        // Predicated region
        $region13: #{tpu_custom_call.1} parent=11 // pred_check
          %p169 = pneg %p65
        $region14: #{tpu_custom_call.1} parent=11 // pred_check_branch
          %171 = sbr.rel (%p169) target = $region16
        $region15: #{tpu_custom_call.1} parent=11 // pred_region
          %s173 = ssub.s32 3072, 3072
          %174 = vsyncadd [#allocation6], %s173
          %s175 = sshll.u32 [#allocation5], 4
          %s176 = int_to_ptr.vmem [resolvable:$true] %s175
          %181 = dma.hbm_to_vmem [thread:$0]  %s1, 3072, %s176, [#allocation6], 64, 64, 4
        $region16: #{tpu_custom_call.1} parent=11 // pred_fallthru
          _
        // Predicated region
        $region17: #{tpu_custom_call.1} parent=11 // pred_check
          %p182 = pneg %p86
        $region18: #{tpu_custom_call.1} parent=11 // pred_check_branch
          %184 = sbr.rel (%p182) target = $region20
        $region19: #{tpu_custom_call.1} parent=11 // pred_region
          _
        $region20: #{tpu_custom_call.1} parent=11 // pred_fallthru
          _
        // Predicated region
        $region21: #{tpu_custom_call.1} parent=11 // pred_check
          %p185 = pneg %p107
        $region22: #{tpu_custom_call.1} parent=11 // pred_check_branch
          %187 = sbr.rel (%p185) target = $region24
        $region23: #{tpu_custom_call.1} parent=11 // pred_region
          %s189 = ssub.s32 3072, 3072
          %190 = vsyncadd [#allocation6], %s189
          %s191 = sshll.u32 [#allocation7], 4
          %s192 = int_to_ptr.vmem [resolvable:$true] %s191
          %197 = dma.hbm_to_vmem [thread:$0]  %s3, 3072, %s192, [#allocation6], 64, 64, 4
        $region24: #{tpu_custom_call.1} parent=11 // pred_fallthru
          _
        // Predicated region
        $region25: #{tpu_custom_call.1} parent=11 // pred_check
          %p198 = pneg %p128
        $region26: #{tpu_custom_call.1} parent=11 // pred_check_branch
          %200 = sbr.rel (%p198) target = $region28
        $region27: #{tpu_custom_call.1} parent=11 // pred_region
          _
        $region28: #{tpu_custom_call.1} parent=11 // pred_fallthru
          _
      $region12: #{tpu_custom_call.1} parent=5 // pred_fallthru
        _
      %p201 = scmp.lt.s32.totalorder %s18, 2
      // Predicated region
      $region29: #{tpu_custom_call.1} parent=5 // pred_check
        %p202 = pneg %p201
      $region30: #{tpu_custom_call.1} parent=5 // pred_check_branch
        %204 = sbr.rel (%p202) target = $region32
      $region31: #{tpu_custom_call.1} parent=5 // pred_region
        // Predicated region
        $region33: #{tpu_custom_call.1} parent=31 // pred_check
          %p205 = pneg %p38
        $region34: #{tpu_custom_call.1} parent=31 // pred_check_branch
          %207 = sbr.rel (%p205) target = $region36
        $region35: #{tpu_custom_call.1} parent=31 // pred_region
          %s208 = sand.u32 %s28, 1
          %s209 = scalar_lea.sflag [#allocation3], %s208
          %s210 = sand.u32 %s28, 1
          %s211 = smul.addr %s210, 16
          %s212 = scalar_lea.vmem [#allocation2], %s211
          %s214 = ssub.s32 256, 256
          %215 = vsyncadd %s209, %s214
          %s216 = smul.addr %s18, 2
          %s217 = smul.addr %s216, 128
          %s218 = scalar_lea.hbm %s0, %s217
          %s219 = sshll.u32 %s212, 4
          %s220 = int_to_ptr.vmem [resolvable:$true] %s219
          %225 = dma.hbm_to_vmem [thread:$0]  %s218, 256, %s220, %s209, 128, 128, 8
        $region36: #{tpu_custom_call.1} parent=31 // pred_fallthru
          _
      $region32: #{tpu_custom_call.1} parent=5 // pred_fallthru
        _
      %p226 = scmp.le.s32.totalorder 1, %s18
      %p227 = scmp.lt.s32.totalorder %s18, 3
      %p228 = pnand %p226, %p227
      %p229 = pneg %p228
      // Predicated region
      $region37: #{tpu_custom_call.1} parent=5 // pred_check
        _
      $region38: #{tpu_custom_call.1} parent=5 // pred_check_branch
        %231 = sbr.rel (%p228) target = $region40
      $region39: #{tpu_custom_call.1} parent=5 // pred_region
        %s232 = ssub.s32 %s18, 1
        %s233 = sand.u32 %s31, 1
        %s234 = scalar_lea.sflag [#allocation3], %s233
        %s235 = sand.u32 %s31, 1
        %s236 = smul.addr %s235, 16
        %s237 = scalar_lea.vmem [#allocation2], %s236
        // Predicated region
        $region41: #{tpu_custom_call.1} parent=39 // pred_check
          %p238 = pneg %p44
        $region42: #{tpu_custom_call.1} parent=39 // pred_check_branch
          %240 = sbr.rel (%p238) target = $region44
        $region43: #{tpu_custom_call.1} parent=39 // pred_region
          %241 = dma.done %s234, 256
        $region44: #{tpu_custom_call.1} parent=39 // pred_fallthru
          _
        // Predicated region
        $region45: #{tpu_custom_call.1} parent=39 // pred_check
          %p242 = pneg %p65
        $region46: #{tpu_custom_call.1} parent=39 // pred_check_branch
          %244 = sbr.rel (%p242) target = $region48
        $region47: #{tpu_custom_call.1} parent=39 // pred_region
          %245 = dma.done [#allocation6], 3072
        $region48: #{tpu_custom_call.1} parent=39 // pred_fallthru
          _
        // Predicated region
        $region49: #{tpu_custom_call.1} parent=39 // pred_check
          %p246 = pneg %p107
        $region50: #{tpu_custom_call.1} parent=39 // pred_check_branch
          %248 = sbr.rel (%p246) target = $region52
        $region51: #{tpu_custom_call.1} parent=39 // pred_region
          %249 = dma.done [#allocation6], 3072
        $region52: #{tpu_custom_call.1} parent=39 // pred_fallthru
          _
        %s250 = sand.u32 %s31, 1
        %s251 = scalar_lea.sflag [#allocation3], %s250
        %s252 = sand.u32 %s31, 1
        %s253 = smul.addr %s252, 16
        %s254 = scalar_lea.vmem [#allocation2], %s253
        %p255 = pneg %p44
        %p256 = pneg %p41
        %p257 = pneg %p65
        %p258 = pneg %p62
        %p259 = pneg %p86
        %p260 = pneg %p83
        %p261 = pneg %p107
        %p262 = pneg %p104
        %p263 = pneg %p128
        %p264 = pneg %p125
        %p265 = pneg %p154
        %p266 = pneg %p151
        %s267 = sand.u32 %s141, 1
        %s268 = scalar_lea.sflag [#allocation4], %s267
        %s269 = sand.u32 %s141, 1
        %s270 = smul.addr %s269, 16
        %s271 = scalar_lea.vmem [#allocation8], %s270
        %v273 = vld [vmem:[%s237] sm:$0xff]
        %v274 = vld [vmem:[%s237 + $0x8] sm:$0xff]
        %v275 = vpack.c.bf16 %v274, %v273
        %v276 = vlaneseq
        %v277 = vshrl.u32 %v276, 7
        %v278 = vadd.s32 %v277, 8
        %v279 = vlaneseq
        %v280 = vand.u32 %v279, 127
        %v281 = vadd.s32 %v280, 1
        %vm282 = vcmp.eq.s32.totalorder %v277, %v281
        %vm283 = vcmp.eq.s32.totalorder %v278, %v281
        %v284 = vsel %vm282, 1, 0
        %v285 = vsel %vm283, 1, 0
        %v286 = vcvt.s32.f32 %v284
        %v287 = vcvt.s32.f32 %v285
        %v288 = vpack.c.bf16 %v287, %v286
        %v289 = vadd.s32 %v277, 1
        %v290 = vadd.s32 %v278, 1
        %vm291 = vcmp.eq.s32.totalorder %v289, %v280
        %vm292 = vcmp.eq.s32.totalorder %v290, %v280
        %v293 = vsel %vm291, 1, 0
        %v294 = vsel %vm292, 1, 0
        %v295 = vcvt.s32.f32 %v293
        %v296 = vcvt.s32.f32 %v294
        %v297 = vpack.c.bf16 %v296, %v295
        %vm298 = vcmask 130048
        %v300 = vsel %vm298, %v288, 0
        %302 = vmatprep.subr.bf16.mxu0 0
        %303 = vmatpush1.bf16.msra.mxu0 %v275
        %304 = vmatprep.subr.bf16.mxu0 0
        %305 = vmatpush1.bf16.msra.mxu0 0
        %306 = vmatprep.subr.bf16.mxu0 0
        %307 = vmatpush1.bf16.msra.mxu0 0
        %308 = vmatprep.subr.bf16.mxu0 0
        %309 = vmatpush1.bf16.msra.mxu0 0
        %310 = vmatprep.subr.bf16.mxu0 0
        %311 = vmatpush1.bf16.msra.mxu0 0
        %312 = vmatprep.subr.bf16.mxu0 0
        %313 = vmatpush1.bf16.msra.mxu0 0
        %314 = vmatprep.subr.bf16.mxu0 0
        %315 = vmatpush1.bf16.msra.mxu0 0
        %316 = vmatprep.subr.bf16.mxu0 0
        %317 = vmatpush1.bf16.msra.mxu0 0
        %318 = vmatprep.subr.bf16.mxu0 0
        %319 = vmatpush1.bf16.msra.mxu0 0
        %320 = vmatprep.subr.bf16.mxu0 0
        %321 = vmatpush1.bf16.msra.mxu0 0
        %322 = vmatprep.subr.bf16.mxu0 0
        %323 = vmatpush1.bf16.msra.mxu0 0
        %324 = vmatprep.subr.bf16.mxu0 0
        %325 = vmatpush1.bf16.msra.mxu0 0
        %326 = vmatprep.subr.bf16.mxu0 0
        %327 = vmatpush1.bf16.msra.mxu0 0
        %328 = vmatprep.subr.bf16.mxu0 0
        %329 = vmatpush1.bf16.msra.mxu0 0
        %330 = vmatprep.subr.bf16.mxu0 0
        %331 = vmatpush1.bf16.msra.mxu0 0
        %332 = vmatprep.subr.bf16.mxu0 0
        %333 = vmatpush1.bf16.msra.mxu0 0
        %334 = vmatprep.mubr.bf16.mxu0 0
        %335 = vmatmul.mubr.bf16.gmra.mrb[0].mxu0 %v300
        %v336 = vpop.f32.mrb[0].mxu0
        %v337 = vadd.f32 0.0, %v336
        %v338 = vpop.f32.mrb[0].mxu0
        %v339 = vpop.f32.mrb[0].mxu0
        %v340 = vadd.f32 0.0, %v339
        %v341 = vpop.f32.mrb[0].mxu0
        %342 = vdwg.mxu0
        %v343 = vpack.c.bf16 %v340, %v337
        %v345 = vsel %vm298, %v297, 0
        %347 = vmatprep.subr.bf16.mxu0 0
        %348 = vmatpush1.bf16.msra.mxu0 %v275
        %349 = vmatprep.subr.bf16.mxu0 0
        %350 = vmatpush1.bf16.msra.mxu0 0
        %351 = vmatprep.subr.bf16.mxu0 0
        %352 = vmatpush1.bf16.msra.mxu0 0
        %353 = vmatprep.subr.bf16.mxu0 0
        %354 = vmatpush1.bf16.msra.mxu0 0
        %355 = vmatprep.subr.bf16.mxu0 0
        %356 = vmatpush1.bf16.msra.mxu0 0
        %357 = vmatprep.subr.bf16.mxu0 0
        %358 = vmatpush1.bf16.msra.mxu0 0
        %359 = vmatprep.subr.bf16.mxu0 0
        %360 = vmatpush1.bf16.msra.mxu0 0
        %361 = vmatprep.subr.bf16.mxu0 0
        %362 = vmatpush1.bf16.msra.mxu0 0
        %363 = vmatprep.subr.bf16.mxu0 0
        %364 = vmatpush1.bf16.msra.mxu0 0
        %365 = vmatprep.subr.bf16.mxu0 0
        %366 = vmatpush1.bf16.msra.mxu0 0
        %367 = vmatprep.subr.bf16.mxu0 0
        %368 = vmatpush1.bf16.msra.mxu0 0
        %369 = vmatprep.subr.bf16.mxu0 0
        %370 = vmatpush1.bf16.msra.mxu0 0
        %371 = vmatprep.subr.bf16.mxu0 0
        %372 = vmatpush1.bf16.msra.mxu0 0
        %373 = vmatprep.subr.bf16.mxu0 0
        %374 = vmatpush1.bf16.msra.mxu0 0
        %375 = vmatprep.subr.bf16.mxu0 0
        %376 = vmatpush1.bf16.msra.mxu0 0
        %377 = vmatprep.subr.bf16.mxu0 0
        %378 = vmatpush1.bf16.msra.mxu0 0
        %379 = vmatprep.mubr.bf16.mxu0 0
        %380 = vmatmul.mubr.bf16.gmra.mrb[0].mxu0 %v345
        %v381 = vpop.f32.mrb[0].mxu0
        %v382 = vadd.f32 0.0, %v381
        %v383 = vpop.f32.mrb[0].mxu0
        %v384 = vpop.f32.mrb[0].mxu0
        %v385 = vadd.f32 0.0, %v384
        %v386 = vpop.f32.mrb[0].mxu0
        %387 = vdwg.mxu0
        %v388 = vpack.c.bf16 %v385, %v382
        %v389 = vld [vmem:[#allocation5] sm:$0xf]
        %v390 = vld [vmem:[#allocation5 + $0x4] sm:$0xf]
        %v391 = vld [vmem:[#allocation5 + $0x8] sm:$0xf]
        %v392 = vld [vmem:[#allocation5 + $0xc] sm:$0xf]
        %v393 = vld [vmem:[#allocation5 + $0x10] sm:$0xf]
        %v394 = vld [vmem:[#allocation5 + $0x14] sm:$0xf]
        %v395 = vld [vmem:[#allocation5 + $0x18] sm:$0xf]
        %v396 = vld [vmem:[#allocation5 + $0x1c] sm:$0xf]
        %v397 = vld [vmem:[#allocation5 + $0x20] sm:$0xf]
        %v398 = vld [vmem:[#allocation5 + $0x24] sm:$0xf]
        %v399 = vld [vmem:[#allocation5 + $0x28] sm:$0xf]
        %v400 = vld [vmem:[#allocation5 + $0x2c] sm:$0xf]
        %v401 = vld [vmem:[#allocation5 + $0x30] sm:$0xf]
        %v402 = vld [vmem:[#allocation5 + $0x34] sm:$0xf]
        %v403 = vld [vmem:[#allocation5 + $0x38] sm:$0xf]
        %v404 = vld [vmem:[#allocation5 + $0x3c] sm:$0xf]
        %s405 = scalar_lea.vmem [#allocation5], 64
        %v406 = vld [vmem:[%s405] sm:$0xf]
        %v407 = vld [vmem:[%s405 + $0x4] sm:$0xf]
        %v408 = vld [vmem:[%s405 + $0x8] sm:$0xf]
        %v409 = vld [vmem:[%s405 + $0xc] sm:$0xf]
        %v410 = vld [vmem:[%s405 + $0x10] sm:$0xf]
        %v411 = vld [vmem:[%s405 + $0x14] sm:$0xf]
        %v412 = vld [vmem:[%s405 + $0x18] sm:$0xf]
        %v413 = vld [vmem:[%s405 + $0x1c] sm:$0xf]
        %v414 = vld [vmem:[%s405 + $0x20] sm:$0xf]
        %v415 = vld [vmem:[%s405 + $0x24] sm:$0xf]
        %v416 = vld [vmem:[%s405 + $0x28] sm:$0xf]
        %v417 = vld [vmem:[%s405 + $0x2c] sm:$0xf]
        %v418 = vld [vmem:[%s405 + $0x30] sm:$0xf]
        %v419 = vld [vmem:[%s405 + $0x34] sm:$0xf]
        %v420 = vld [vmem:[%s405 + $0x38] sm:$0xf]
        %v421 = vld [vmem:[%s405 + $0x3c] sm:$0xf]
        %v438 = vunpack.c.l.b16 %v406
        %v439 = vunpack.c.l.b16 %v407
        %v440 = vunpack.c.l.b16 %v408
        %v441 = vunpack.c.l.b16 %v409
        %v442 = vunpack.c.l.b16 %v410
        %v443 = vunpack.c.l.b16 %v411
        %v444 = vunpack.c.l.b16 %v412
        %v445 = vunpack.c.l.b16 %v413
        %v446 = vunpack.c.l.b16 %v414
        %v447 = vunpack.c.l.b16 %v415
        %v448 = vunpack.c.l.b16 %v416
        %v449 = vunpack.c.l.b16 %v417
        %v450 = vunpack.c.l.b16 %v418
        %v451 = vunpack.c.l.b16 %v419
        %v452 = vunpack.c.l.b16 %v420
        %v453 = vunpack.c.l.b16 %v421
        %v454 = vpack.c.b16 %v439, %v438
        %v455 = vpack.c.b16 %v441, %v440
        %v456 = vpack.c.b16 %v443, %v442
        %v457 = vpack.c.b16 %v445, %v444
        %v458 = vpack.c.b16 %v447, %v446
        %v459 = vpack.c.b16 %v449, %v448
        %v460 = vpack.c.b16 %v451, %v450
        %v461 = vpack.c.b16 %v453, %v452
        %470 = vmatprep.subr.bf16.mxu0 0
        %471 = vmatpush1.bf16.msra.mxu0 %v454
        %472 = vmatprep.subr.bf16.mxu0 0
        %473 = vmatpush1.bf16.msra.mxu0 %v455
        %474 = vmatprep.subr.bf16.mxu0 0
        %475 = vmatpush1.bf16.msra.mxu0 %v456
        %476 = vmatprep.subr.bf16.mxu0 0
        %477 = vmatpush1.bf16.msra.mxu0 %v457
        %478 = vmatprep.subr.bf16.mxu0 0
        %479 = vmatpush1.bf16.msra.mxu0 %v458
        %480 = vmatprep.subr.bf16.mxu0 0
        %481 = vmatpush1.bf16.msra.mxu0 %v459
        %482 = vmatprep.subr.bf16.mxu0 0
        %483 = vmatpush1.bf16.msra.mxu0 %v460
        %484 = vmatprep.subr.bf16.mxu0 0
        %485 = vmatpush1.bf16.msra.mxu0 %v461
        %486 = vmatprep.subr.bf16.mxu0 0
        %487 = vmatpush1.bf16.msra.mxu0 0
        %488 = vmatprep.subr.bf16.mxu0 0
        %489 = vmatpush1.bf16.msra.mxu0 0
        %490 = vmatprep.subr.bf16.mxu0 0
        %491 = vmatpush1.bf16.msra.mxu0 0
        %492 = vmatprep.subr.bf16.mxu0 0
        %493 = vmatpush1.bf16.msra.mxu0 0
        %494 = vmatprep.subr.bf16.mxu0 0
        %495 = vmatpush1.bf16.msra.mxu0 0
        %496 = vmatprep.subr.bf16.mxu0 0
        %497 = vmatpush1.bf16.msra.mxu0 0
        %498 = vmatprep.subr.bf16.mxu0 0
        %499 = vmatpush1.bf16.msra.mxu0 0
        %500 = vmatprep.subr.bf16.mxu0 0
        %501 = vmatpush1.bf16.msra.mxu0 0
        %502 = vmatprep.mubr.bf16.mxu0 0
        %503 = vmatmul.mubr.bf16.gmra.mrb[0].mxu0 %v275
        %v504 = vpop.f32.mrb[0].mxu0
        %v505 = vadd.f32 0.0, %v504
        %v506 = vpop.f32.mrb[0].mxu0
        %v507 = vpop.f32.mrb[0].mxu0
        %v508 = vadd.f32 0.0, %v507
        %v509 = vpop.f32.mrb[0].mxu0
        %510 = vdwg.mxu0
        %v527 = vunpack.c.l.b16 %v389
        %v528 = vunpack.c.l.b16 %v390
        %v529 = vunpack.c.l.b16 %v391
        %v530 = vunpack.c.l.b16 %v392
        %v531 = vunpack.c.l.b16 %v393
        %v532 = vunpack.c.l.b16 %v394
        %v533 = vunpack.c.l.b16 %v395
        %v534 = vunpack.c.l.b16 %v396
        %v535 = vunpack.c.l.b16 %v397
        %v536 = vunpack.c.l.b16 %v398
        %v537 = vunpack.c.l.b16 %v399
        %v538 = vunpack.c.l.b16 %v400
        %v539 = vunpack.c.l.b16 %v401
        %v540 = vunpack.c.l.b16 %v402
        %v541 = vunpack.c.l.b16 %v403
        %v542 = vunpack.c.l.b16 %v404
        %v543 = vpack.c.b16 %v528, %v527
        %v544 = vpack.c.b16 %v530, %v529
        %v545 = vpack.c.b16 %v532, %v531
        %v546 = vpack.c.b16 %v534, %v533
        %v547 = vpack.c.b16 %v536, %v535
        %v548 = vpack.c.b16 %v538, %v537
        %v549 = vpack.c.b16 %v540, %v539
        %v550 = vpack.c.b16 %v542, %v541
        %559 = vmatprep.subr.bf16.mxu0 0
        %560 = vmatpush1.bf16.msra.mxu0 %v543
        %561 = vmatprep.subr.bf16.mxu0 0
        %562 = vmatpush1.bf16.msra.mxu0 %v544
        %563 = vmatprep.subr.bf16.mxu0 0
        %564 = vmatpush1.bf16.msra.mxu0 %v545
        %565 = vmatprep.subr.bf16.mxu0 0
        %566 = vmatpush1.bf16.msra.mxu0 %v546
        %567 = vmatprep.subr.bf16.mxu0 0
        %568 = vmatpush1.bf16.msra.mxu0 %v547
        %569 = vmatprep.subr.bf16.mxu0 0
        %570 = vmatpush1.bf16.msra.mxu0 %v548
        %571 = vmatprep.subr.bf16.mxu0 0
        %572 = vmatpush1.bf16.msra.mxu0 %v549
        %573 = vmatprep.subr.bf16.mxu0 0
        %574 = vmatpush1.bf16.msra.mxu0 %v550
        %575 = vmatprep.subr.bf16.mxu0 0
        %576 = vmatpush1.bf16.msra.mxu0 0
        %577 = vmatprep.subr.bf16.mxu0 0
        %578 = vmatpush1.bf16.msra.mxu0 0
        %579 = vmatprep.subr.bf16.mxu0 0
        %580 = vmatpush1.bf16.msra.mxu0 0
        %581 = vmatprep.subr.bf16.mxu0 0
        %582 = vmatpush1.bf16.msra.mxu0 0
        %583 = vmatprep.subr.bf16.mxu0 0
        %584 = vmatpush1.bf16.msra.mxu0 0
        %585 = vmatprep.subr.bf16.mxu0 0
        %586 = vmatpush1.bf16.msra.mxu0 0
        %587 = vmatprep.subr.bf16.mxu0 0
        %588 = vmatpush1.bf16.msra.mxu0 0
        %589 = vmatprep.subr.bf16.mxu0 0
        %590 = vmatpush1.bf16.msra.mxu0 0
        %591 = vmatprep.mubr.bf16.mxu0 0
        %592 = vmatmul.mubr.bf16.gmra.mrb[0].mxu0 %v343
        %v593 = vpop.f32.mrb[0].mxu0
        %v594 = vadd.f32 %v505, %v593
        %v595 = vpop.f32.mrb[0].mxu0
        %v596 = vpop.f32.mrb[0].mxu0
        %v597 = vadd.f32 %v508, %v596
        %v598 = vpop.f32.mrb[0].mxu0
        %599 = vdwg.mxu0
        %s600 = scalar_lea.vmem [#allocation5], 128
        %v601 = vld [vmem:[%s600] sm:$0xf]
        %v602 = vld [vmem:[%s600 + $0x4] sm:$0xf]
        %v603 = vld [vmem:[%s600 + $0x8] sm:$0xf]
        %v604 = vld [vmem:[%s600 + $0xc] sm:$0xf]
        %v605 = vld [vmem:[%s600 + $0x10] sm:$0xf]
        %v606 = vld [vmem:[%s600 + $0x14] sm:$0xf]
        %v607 = vld [vmem:[%s600 + $0x18] sm:$0xf]
        %v608 = vld [vmem:[%s600 + $0x1c] sm:$0xf]
        %v609 = vld [vmem:[%s600 + $0x20] sm:$0xf]
        %v610 = vld [vmem:[%s600 + $0x24] sm:$0xf]
        %v611 = vld [vmem:[%s600 + $0x28] sm:$0xf]
        %v612 = vld [vmem:[%s600 + $0x2c] sm:$0xf]
        %v613 = vld [vmem:[%s600 + $0x30] sm:$0xf]
        %v614 = vld [vmem:[%s600 + $0x34] sm:$0xf]
        %v615 = vld [vmem:[%s600 + $0x38] sm:$0xf]
        %v616 = vld [vmem:[%s600 + $0x3c] sm:$0xf]
        %v633 = vunpack.c.l.b16 %v601
        %v634 = vunpack.c.l.b16 %v602
        %v635 = vunpack.c.l.b16 %v603
        %v636 = vunpack.c.l.b16 %v604
        %v637 = vunpack.c.l.b16 %v605
        %v638 = vunpack.c.l.b16 %v606
        %v639 = vunpack.c.l.b16 %v607
        %v640 = vunpack.c.l.b16 %v608
        %v641 = vunpack.c.l.b16 %v609
        %v642 = vunpack.c.l.b16 %v610
        %v643 = vunpack.c.l.b16 %v611
        %v644 = vunpack.c.l.b16 %v612
        %v645 = vunpack.c.l.b16 %v613
        %v646 = vunpack.c.l.b16 %v614
        %v647 = vunpack.c.l.b16 %v615
        %v648 = vunpack.c.l.b16 %v616
        %v649 = vpack.c.b16 %v634, %v633
        %v650 = vpack.c.b16 %v636, %v635
        %v651 = vpack.c.b16 %v638, %v637
        %v652 = vpack.c.b16 %v640, %v639
        %v653 = vpack.c.b16 %v642, %v641
        %v654 = vpack.c.b16 %v644, %v643
        %v655 = vpack.c.b16 %v646, %v645
        %v656 = vpack.c.b16 %v648, %v647
        %665 = vmatprep.subr.bf16.mxu0 0
        %666 = vmatpush1.bf16.msra.mxu0 %v649
        %667 = vmatprep.subr.bf16.mxu0 0
        %668 = vmatpush1.bf16.msra.mxu0 %v650
        %669 = vmatprep.subr.bf16.mxu0 0
        %670 = vmatpush1.bf16.msra.mxu0 %v651
        %671 = vmatprep.subr.bf16.mxu0 0
        %672 = vmatpush1.bf16.msra.mxu0 %v652
        %673 = vmatprep.subr.bf16.mxu0 0
        %674 = vmatpush1.bf16.msra.mxu0 %v653
        %675 = vmatprep.subr.bf16.mxu0 0
        %676 = vmatpush1.bf16.msra.mxu0 %v654
        %677 = vmatprep.subr.bf16.mxu0 0
        %678 = vmatpush1.bf16.msra.mxu0 %v655
        %679 = vmatprep.subr.bf16.mxu0 0
        %680 = vmatpush1.bf16.msra.mxu0 %v656
        %681 = vmatprep.subr.bf16.mxu0 0
        %682 = vmatpush1.bf16.msra.mxu0 0
        %683 = vmatprep.subr.bf16.mxu0 0
        %684 = vmatpush1.bf16.msra.mxu0 0
        %685 = vmatprep.subr.bf16.mxu0 0
        %686 = vmatpush1.bf16.msra.mxu0 0
        %687 = vmatprep.subr.bf16.mxu0 0
        %688 = vmatpush1.bf16.msra.mxu0 0
        %689 = vmatprep.subr.bf16.mxu0 0
        %690 = vmatpush1.bf16.msra.mxu0 0
        %691 = vmatprep.subr.bf16.mxu0 0
        %692 = vmatpush1.bf16.msra.mxu0 0
        %693 = vmatprep.subr.bf16.mxu0 0
        %694 = vmatpush1.bf16.msra.mxu0 0
        %695 = vmatprep.subr.bf16.mxu0 0
        %696 = vmatpush1.bf16.msra.mxu0 0
        %697 = vmatprep.mubr.bf16.mxu0 0
        %698 = vmatmul.mubr.bf16.gmra.mrb[0].mxu0 %v388
        %v699 = vpop.f32.mrb[0].mxu0
        %v700 = vadd.f32 0.0, %v699
        %v701 = vpop.f32.mrb[0].mxu0
        %v702 = vpop.f32.mrb[0].mxu0
        %v703 = vadd.f32 0.0, %v702
        %v704 = vpop.f32.mrb[0].mxu0
        %705 = vdwg.mxu0
        %v706 = vadd.f32 %v594, %v700
        %v707 = vadd.f32 %v597, %v703
        %v708 = vld [vmem:[%s2] sm:$0x1]
        %v710 = vlaneseq
        %v711 = vshrl.u32 %v710, 7
        %v712 = vsub.s32 0, %v711
        %v713 = vrot.slane %v708, %v712
        %v715 = vadd.f32 %v706, %v713
        %v716 = vadd.f32 %v707, %v713
        %v717 = vmax.f32 %v715, 0.0
        %v718 = vmax.f32 %v716, 0.0
        %v719 = vpack.c.bf16 %v718, %v717
        %720 = vmatprep.subr.bf16.mxu0 0
        %721 = vmatpush1.bf16.msra.mxu0 %v719
        %722 = vmatprep.subr.bf16.mxu0 0
        %723 = vmatpush1.bf16.msra.mxu0 0
        %724 = vmatprep.subr.bf16.mxu0 0
        %725 = vmatpush1.bf16.msra.mxu0 0
        %726 = vmatprep.subr.bf16.mxu0 0
        %727 = vmatpush1.bf16.msra.mxu0 0
        %728 = vmatprep.subr.bf16.mxu0 0
        %729 = vmatpush1.bf16.msra.mxu0 0
        %730 = vmatprep.subr.bf16.mxu0 0
        %731 = vmatpush1.bf16.msra.mxu0 0
        %732 = vmatprep.subr.bf16.mxu0 0
        %733 = vmatpush1.bf16.msra.mxu0 0
        %734 = vmatprep.subr.bf16.mxu0 0
        %735 = vmatpush1.bf16.msra.mxu0 0
        %736 = vmatprep.subr.bf16.mxu0 0
        %737 = vmatpush1.bf16.msra.mxu0 0
        %738 = vmatprep.subr.bf16.mxu0 0
        %739 = vmatpush1.bf16.msra.mxu0 0
        %740 = vmatprep.subr.bf16.mxu0 0
        %741 = vmatpush1.bf16.msra.mxu0 0
        %742 = vmatprep.subr.bf16.mxu0 0
        %743 = vmatpush1.bf16.msra.mxu0 0
        %744 = vmatprep.subr.bf16.mxu0 0
        %745 = vmatpush1.bf16.msra.mxu0 0
        %746 = vmatprep.subr.bf16.mxu0 0
        %747 = vmatpush1.bf16.msra.mxu0 0
        %748 = vmatprep.subr.bf16.mxu0 0
        %749 = vmatpush1.bf16.msra.mxu0 0
        %750 = vmatprep.subr.bf16.mxu0 0
        %751 = vmatpush1.bf16.msra.mxu0 0
        %752 = vmatprep.mubr.bf16.mxu0 0
        %753 = vmatmul.mubr.bf16.gmra.mrb[0].mxu0 %v300
        %v754 = vpop.f32.mrb[0].mxu0
        %v755 = vadd.f32 0.0, %v754
        %v756 = vpop.f32.mrb[0].mxu0
        %v757 = vpop.f32.mrb[0].mxu0
        %v758 = vadd.f32 0.0, %v757
        %v759 = vpop.f32.mrb[0].mxu0
        %760 = vdwg.mxu0
        %v761 = vpack.c.bf16 %v758, %v755
        %762 = vmatprep.subr.bf16.mxu0 0
        %763 = vmatpush1.bf16.msra.mxu0 %v719
        %764 = vmatprep.subr.bf16.mxu0 0
        %765 = vmatpush1.bf16.msra.mxu0 0
        %766 = vmatprep.subr.bf16.mxu0 0
        %767 = vmatpush1.bf16.msra.mxu0 0
        %768 = vmatprep.subr.bf16.mxu0 0
        %769 = vmatpush1.bf16.msra.mxu0 0
        %770 = vmatprep.subr.bf16.mxu0 0
        %771 = vmatpush1.bf16.msra.mxu0 0
        %772 = vmatprep.subr.bf16.mxu0 0
        %773 = vmatpush1.bf16.msra.mxu0 0
        %774 = vmatprep.subr.bf16.mxu0 0
        %775 = vmatpush1.bf16.msra.mxu0 0
        %776 = vmatprep.subr.bf16.mxu0 0
        %777 = vmatpush1.bf16.msra.mxu0 0
        %778 = vmatprep.subr.bf16.mxu0 0
        %779 = vmatpush1.bf16.msra.mxu0 0
        %780 = vmatprep.subr.bf16.mxu0 0
        %781 = vmatpush1.bf16.msra.mxu0 0
        %782 = vmatprep.subr.bf16.mxu0 0
        %783 = vmatpush1.bf16.msra.mxu0 0
        %784 = vmatprep.subr.bf16.mxu0 0
        %785 = vmatpush1.bf16.msra.mxu0 0
        %786 = vmatprep.subr.bf16.mxu0 0
        %787 = vmatpush1.bf16.msra.mxu0 0
        %788 = vmatprep.subr.bf16.mxu0 0
        %789 = vmatpush1.bf16.msra.mxu0 0
        %790 = vmatprep.subr.bf16.mxu0 0
        %791 = vmatpush1.bf16.msra.mxu0 0
        %792 = vmatprep.subr.bf16.mxu0 0
        %793 = vmatpush1.bf16.msra.mxu0 0
        %794 = vmatprep.mubr.bf16.mxu0 0
        %795 = vmatmul.mubr.bf16.gmra.mrb[0].mxu0 %v345
        %v796 = vpop.f32.mrb[0].mxu0
        %v797 = vadd.f32 0.0, %v796
        %v798 = vpop.f32.mrb[0].mxu0
        %v799 = vpop.f32.mrb[0].mxu0
        %v800 = vadd.f32 0.0, %v799
        %v801 = vpop.f32.mrb[0].mxu0
        %802 = vdwg.mxu0
        %v803 = vpack.c.bf16 %v800, %v797
        %v804 = vld [vmem:[#allocation7] sm:$0xf]
        %v805 = vld [vmem:[#allocation7 + $0x4] sm:$0xf]
        %v806 = vld [vmem:[#allocation7 + $0x8] sm:$0xf]
        %v807 = vld [vmem:[#allocation7 + $0xc] sm:$0xf]
        %v808 = vld [vmem:[#allocation7 + $0x10] sm:$0xf]
        %v809 = vld [vmem:[#allocation7 + $0x14] sm:$0xf]
        %v810 = vld [vmem:[#allocation7 + $0x18] sm:$0xf]
        %v811 = vld [vmem:[#allocation7 + $0x1c] sm:$0xf]
        %v812 = vld [vmem:[#allocation7 + $0x20] sm:$0xf]
        %v813 = vld [vmem:[#allocation7 + $0x24] sm:$0xf]
        %v814 = vld [vmem:[#allocation7 + $0x28] sm:$0xf]
        %v815 = vld [vmem:[#allocation7 + $0x2c] sm:$0xf]
        %v816 = vld [vmem:[#allocation7 + $0x30] sm:$0xf]
        %v817 = vld [vmem:[#allocation7 + $0x34] sm:$0xf]
        %v818 = vld [vmem:[#allocation7 + $0x38] sm:$0xf]
        %v819 = vld [vmem:[#allocation7 + $0x3c] sm:$0xf]
        %s820 = scalar_lea.vmem [#allocation7], 64
        %v821 = vld [vmem:[%s820] sm:$0xf]
        %v822 = vld [vmem:[%s820 + $0x4] sm:$0xf]
        %v823 = vld [vmem:[%s820 + $0x8] sm:$0xf]
        %v824 = vld [vmem:[%s820 + $0xc] sm:$0xf]
        %v825 = vld [vmem:[%s820 + $0x10] sm:$0xf]
        %v826 = vld [vmem:[%s820 + $0x14] sm:$0xf]
        %v827 = vld [vmem:[%s820 + $0x18] sm:$0xf]
        %v828 = vld [vmem:[%s820 + $0x1c] sm:$0xf]
        %v829 = vld [vmem:[%s820 + $0x20] sm:$0xf]
        %v830 = vld [vmem:[%s820 + $0x24] sm:$0xf]
        %v831 = vld [vmem:[%s820 + $0x28] sm:$0xf]
        %v832 = vld [vmem:[%s820 + $0x2c] sm:$0xf]
        %v833 = vld [vmem:[%s820 + $0x30] sm:$0xf]
        %v834 = vld [vmem:[%s820 + $0x34] sm:$0xf]
        %v835 = vld [vmem:[%s820 + $0x38] sm:$0xf]
        %v836 = vld [vmem:[%s820 + $0x3c] sm:$0xf]
        %v853 = vunpack.c.l.b16 %v821
        %v854 = vunpack.c.l.b16 %v822
        %v855 = vunpack.c.l.b16 %v823
        %v856 = vunpack.c.l.b16 %v824
        %v857 = vunpack.c.l.b16 %v825
        %v858 = vunpack.c.l.b16 %v826
        %v859 = vunpack.c.l.b16 %v827
        %v860 = vunpack.c.l.b16 %v828
        %v861 = vunpack.c.l.b16 %v829
        %v862 = vunpack.c.l.b16 %v830
        %v863 = vunpack.c.l.b16 %v831
        %v864 = vunpack.c.l.b16 %v832
        %v865 = vunpack.c.l.b16 %v833
        %v866 = vunpack.c.l.b16 %v834
        %v867 = vunpack.c.l.b16 %v835
        %v868 = vunpack.c.l.b16 %v836
        %v869 = vpack.c.b16 %v854, %v853
        %v870 = vpack.c.b16 %v856, %v855
        %v871 = vpack.c.b16 %v858, %v857
        %v872 = vpack.c.b16 %v860, %v859
        %v873 = vpack.c.b16 %v862, %v861
        %v874 = vpack.c.b16 %v864, %v863
        %v875 = vpack.c.b16 %v866, %v865
        %v876 = vpack.c.b16 %v868, %v867
        %885 = vmatprep.subr.bf16.mxu0 0
        %886 = vmatpush1.bf16.msra.mxu0 %v869
        %887 = vmatprep.subr.bf16.mxu0 0
        %888 = vmatpush1.bf16.msra.mxu0 %v870
        %889 = vmatprep.subr.bf16.mxu0 0
        %890 = vmatpush1.bf16.msra.mxu0 %v871
        %891 = vmatprep.subr.bf16.mxu0 0
        %892 = vmatpush1.bf16.msra.mxu0 %v872
        %893 = vmatprep.subr.bf16.mxu0 0
        %894 = vmatpush1.bf16.msra.mxu0 %v873
        %895 = vmatprep.subr.bf16.mxu0 0
        %896 = vmatpush1.bf16.msra.mxu0 %v874
        %897 = vmatprep.subr.bf16.mxu0 0
        %898 = vmatpush1.bf16.msra.mxu0 %v875
        %899 = vmatprep.subr.bf16.mxu0 0
        %900 = vmatpush1.bf16.msra.mxu0 %v876
        %901 = vmatprep.subr.bf16.mxu0 0
        %902 = vmatpush1.bf16.msra.mxu0 0
        %903 = vmatprep.subr.bf16.mxu0 0
        %904 = vmatpush1.bf16.msra.mxu0 0
        %905 = vmatprep.subr.bf16.mxu0 0
        %906 = vmatpush1.bf16.msra.mxu0 0
        %907 = vmatprep.subr.bf16.mxu0 0
        %908 = vmatpush1.bf16.msra.mxu0 0
        %909 = vmatprep.subr.bf16.mxu0 0
        %910 = vmatpush1.bf16.msra.mxu0 0
        %911 = vmatprep.subr.bf16.mxu0 0
        %912 = vmatpush1.bf16.msra.mxu0 0
        %913 = vmatprep.subr.bf16.mxu0 0
        %914 = vmatpush1.bf16.msra.mxu0 0
        %915 = vmatprep.subr.bf16.mxu0 0
        %916 = vmatpush1.bf16.msra.mxu0 0
        %917 = vmatprep.mubr.bf16.mxu0 0
        %918 = vmatmul.mubr.bf16.gmra.mrb[0].mxu0 %v719
        %v919 = vpop.f32.mrb[0].mxu0
        %v920 = vadd.f32 0.0, %v919
        %v921 = vpop.f32.mrb[0].mxu0
        %v922 = vpop.f32.mrb[0].mxu0
        %v923 = vadd.f32 0.0, %v922
        %v924 = vpop.f32.mrb[0].mxu0
        %925 = vdwg.mxu0
        %v942 = vunpack.c.l.b16 %v804
        %v943 = vunpack.c.l.b16 %v805
        %v944 = vunpack.c.l.b16 %v806
        %v945 = vunpack.c.l.b16 %v807
        %v946 = vunpack.c.l.b16 %v808
        %v947 = vunpack.c.l.b16 %v809
        %v948 = vunpack.c.l.b16 %v810
        %v949 = vunpack.c.l.b16 %v811
        %v950 = vunpack.c.l.b16 %v812
        %v951 = vunpack.c.l.b16 %v813
        %v952 = vunpack.c.l.b16 %v814
        %v953 = vunpack.c.l.b16 %v815
        %v954 = vunpack.c.l.b16 %v816
        %v955 = vunpack.c.l.b16 %v817
        %v956 = vunpack.c.l.b16 %v818
        %v957 = vunpack.c.l.b16 %v819
        %v958 = vpack.c.b16 %v943, %v942
        %v959 = vpack.c.b16 %v945, %v944
        %v960 = vpack.c.b16 %v947, %v946
        %v961 = vpack.c.b16 %v949, %v948
        %v962 = vpack.c.b16 %v951, %v950
        %v963 = vpack.c.b16 %v953, %v952
        %v964 = vpack.c.b16 %v955, %v954
        %v965 = vpack.c.b16 %v957, %v956
        %974 = vmatprep.subr.bf16.mxu0 0
        %975 = vmatpush1.bf16.msra.mxu0 %v958
        %976 = vmatprep.subr.bf16.mxu0 0
        %977 = vmatpush1.bf16.msra.mxu0 %v959
        %978 = vmatprep.subr.bf16.mxu0 0
        %979 = vmatpush1.bf16.msra.mxu0 %v960
        %980 = vmatprep.subr.bf16.mxu0 0
        %981 = vmatpush1.bf16.msra.mxu0 %v961
        %982 = vmatprep.subr.bf16.mxu0 0
        %983 = vmatpush1.bf16.msra.mxu0 %v962
        %984 = vmatprep.subr.bf16.mxu0 0
        %985 = vmatpush1.bf16.msra.mxu0 %v963
        %986 = vmatprep.subr.bf16.mxu0 0
        %987 = vmatpush1.bf16.msra.mxu0 %v964
        %988 = vmatprep.subr.bf16.mxu0 0
        %989 = vmatpush1.bf16.msra.mxu0 %v965
        %990 = vmatprep.subr.bf16.mxu0 0
        %991 = vmatpush1.bf16.msra.mxu0 0
        %992 = vmatprep.subr.bf16.mxu0 0
        %993 = vmatpush1.bf16.msra.mxu0 0
        %994 = vmatprep.subr.bf16.mxu0 0
        %995 = vmatpush1.bf16.msra.mxu0 0
        %996 = vmatprep.subr.bf16.mxu0 0
        %997 = vmatpush1.bf16.msra.mxu0 0
        %998 = vmatprep.subr.bf16.mxu0 0
        %999 = vmatpush1.bf16.msra.mxu0 0
        %1000 = vmatprep.subr.bf16.mxu0 0
        %1001 = vmatpush1.bf16.msra.mxu0 0
        %1002 = vmatprep.subr.bf16.mxu0 0
        %1003 = vmatpush1.bf16.msra.mxu0 0
        %1004 = vmatprep.subr.bf16.mxu0 0
        %1005 = vmatpush1.bf16.msra.mxu0 0
        %1006 = vmatprep.mubr.bf16.mxu0 0
        %1007 = vmatmul.mubr.bf16.gmra.mrb[0].mxu0 %v761
        %v1008 = vpop.f32.mrb[0].mxu0
        %v1009 = vadd.f32 %v920, %v1008
        %v1010 = vpop.f32.mrb[0].mxu0
        %v1011 = vpop.f32.mrb[0].mxu0
        %v1012 = vadd.f32 %v923, %v1011
        %v1013 = vpop.f32.mrb[0].mxu0
        %1014 = vdwg.mxu0
        %s1015 = scalar_lea.vmem [#allocation7], 128
        %v1016 = vld [vmem:[%s1015] sm:$0xf]
        %v1017 = vld [vmem:[%s1015 + $0x4] sm:$0xf]
        %v1018 = vld [vmem:[%s1015 + $0x8] sm:$0xf]
        %v1019 = vld [vmem:[%s1015 + $0xc] sm:$0xf]
        %v1020 = vld [vmem:[%s1015 + $0x10] sm:$0xf]
        %v1021 = vld [vmem:[%s1015 + $0x14] sm:$0xf]
        %v1022 = vld [vmem:[%s1015 + $0x18] sm:$0xf]
        %v1023 = vld [vmem:[%s1015 + $0x1c] sm:$0xf]
        %v1024 = vld [vmem:[%s1015 + $0x20] sm:$0xf]
        %v1025 = vld [vmem:[%s1015 + $0x24] sm:$0xf]
        %v1026 = vld [vmem:[%s1015 + $0x28] sm:$0xf]
        %v1027 = vld [vmem:[%s1015 + $0x2c] sm:$0xf]
        %v1028 = vld [vmem:[%s1015 + $0x30] sm:$0xf]
        %v1029 = vld [vmem:[%s1015 + $0x34] sm:$0xf]
        %v1030 = vld [vmem:[%s1015 + $0x38] sm:$0xf]
        %v1031 = vld [vmem:[%s1015 + $0x3c] sm:$0xf]
        %v1048 = vunpack.c.l.b16 %v1016
        %v1049 = vunpack.c.l.b16 %v1017
        %v1050 = vunpack.c.l.b16 %v1018
        %v1051 = vunpack.c.l.b16 %v1019
        %v1052 = vunpack.c.l.b16 %v1020
        %v1053 = vunpack.c.l.b16 %v1021
        %v1054 = vunpack.c.l.b16 %v1022
        %v1055 = vunpack.c.l.b16 %v1023
        %v1056 = vunpack.c.l.b16 %v1024
        %v1057 = vunpack.c.l.b16 %v1025
        %v1058 = vunpack.c.l.b16 %v1026
        %v1059 = vunpack.c.l.b16 %v1027
        %v1060 = vunpack.c.l.b16 %v1028
        %v1061 = vunpack.c.l.b16 %v1029
        %v1062 = vunpack.c.l.b16 %v1030
        %v1063 = vunpack.c.l.b16 %v1031
        %v1064 = vpack.c.b16 %v1049, %v1048
        %v1065 = vpack.c.b16 %v1051, %v1050
        %v1066 = vpack.c.b16 %v1053, %v1052
        %v1067 = vpack.c.b16 %v1055, %v1054
        %v1068 = vpack.c.b16 %v1057, %v1056
        %v1069 = vpack.c.b16 %v1059, %v1058
        %v1070 = vpack.c.b16 %v1061, %v1060
        %v1071 = vpack.c.b16 %v1063, %v1062
        %1080 = vmatprep.subr.bf16.mxu0 0
        %1081 = vmatpush1.bf16.msra.mxu0 %v1064
        %1082 = vmatprep.subr.bf16.mxu0 0
        %1083 = vmatpush1.bf16.msra.mxu0 %v1065
        %1084 = vmatprep.subr.bf16.mxu0 0
        %1085 = vmatpush1.bf16.msra.mxu0 %v1066
        %1086 = vmatprep.subr.bf16.mxu0 0
        %1087 = vmatpush1.bf16.msra.mxu0 %v1067
        %1088 = vmatprep.subr.bf16.mxu0 0
        %1089 = vmatpush1.bf16.msra.mxu0 %v1068
        %1090 = vmatprep.subr.bf16.mxu0 0
        %1091 = vmatpush1.bf16.msra.mxu0 %v1069
        %1092 = vmatprep.subr.bf16.mxu0 0
        %1093 = vmatpush1.bf16.msra.mxu0 %v1070
        %1094 = vmatprep.subr.bf16.mxu0 0
        %1095 = vmatpush1.bf16.msra.mxu0 %v1071
        %1096 = vmatprep.subr.bf16.mxu0 0
        %1097 = vmatpush1.bf16.msra.mxu0 0
        %1098 = vmatprep.subr.bf16.mxu0 0
        %1099 = vmatpush1.bf16.msra.mxu0 0
        %1100 = vmatprep.subr.bf16.mxu0 0
        %1101 = vmatpush1.bf16.msra.mxu0 0
        %1102 = vmatprep.subr.bf16.mxu0 0
        %1103 = vmatpush1.bf16.msra.mxu0 0
        %1104 = vmatprep.subr.bf16.mxu0 0
        %1105 = vmatpush1.bf16.msra.mxu0 0
        %1106 = vmatprep.subr.bf16.mxu0 0
        %1107 = vmatpush1.bf16.msra.mxu0 0
        %1108 = vmatprep.subr.bf16.mxu0 0
        %1109 = vmatpush1.bf16.msra.mxu0 0
        %1110 = vmatprep.subr.bf16.mxu0 0
        %1111 = vmatpush1.bf16.msra.mxu0 0
        %1112 = vmatprep.mubr.bf16.mxu0 0
        %1113 = vmatmul.mubr.bf16.gmra.mrb[0].mxu0 %v803
        %v1114 = vpop.f32.mrb[0].mxu0
        %v1115 = vadd.f32 0.0, %v1114
        %v1116 = vpop.f32.mrb[0].mxu0
        %v1117 = vpop.f32.mrb[0].mxu0
        %v1118 = vadd.f32 0.0, %v1117
        %v1119 = vpop.f32.mrb[0].mxu0
        %1120 = vdwg.mxu0
        %v1121 = vadd.f32 %v1009, %v1115
        %v1122 = vadd.f32 %v1012, %v1118
        %v1123 = vld [vmem:[%s4] sm:$0x1]
        %v1125 = vlaneseq
        %v1126 = vshrl.u32 %v1125, 7
        %v1127 = vsub.s32 0, %v1126
        %v1128 = vrot.slane %v1123, %v1127
        %v1130 = vadd.f32 %v1121, %v1128
        %v1131 = vadd.f32 %v1122, %v1128
        %v1132 = vadd.f32 %v1130, %v273
        %v1133 = vadd.f32 %v1131, %v274
        %v1134 = vmax.f32 %v1132, 0.0
        %v1135 = vmax.f32 %v1133, 0.0
        %1136 = vst [vmem:[%s271] sm:$0xff] %v1134
        %1137 = vst [vmem:[%s271 + $0x8] sm:$0xff] %v1135
        %s1138 = sand.u32 %s141, 1
        %s1139 = scalar_lea.sflag [#allocation4], %s1138
        %s1140 = sand.u32 %s141, 1
        %s1141 = smul.addr %s1140, 16
        %s1142 = scalar_lea.vmem [#allocation8], %s1141
        // Predicated region
        $region53: #{tpu_custom_call.1} parent=39 // pred_check
          %p1143 = pneg %p151
        $region54: #{tpu_custom_call.1} parent=39 // pred_check_branch
          %1145 = sbr.rel (%p1143) target = $region56
        $region55: #{tpu_custom_call.1} parent=39 // pred_region
          %s1147 = ssub.s32 256, 256
          %1148 = vsyncadd %s1139, %s1147
          %s1149 = smul.addr %s23, 2
          %s1150 = smul.addr %s1149, 128
          %s1151 = scalar_lea.hbm %s5, %s1150
          %s1152 = sshll.u32 %s1142, 4
          %s1153 = int_to_ptr.vmem [resolvable:$true] %s1152
          %1158 = dma.vmem_to_hbm [thread:$0]  %s1153, 256, %s1151, %s1139, 128, 128, 8
        $region56: #{tpu_custom_call.1} parent=39 // pred_fallthru
          _
      $region40: #{tpu_custom_call.1} parent=5 // pred_fallthru
        _
      %p1159 = scmp.le.s32.totalorder 2, %s18
      // Predicated region
      $region57: #{tpu_custom_call.1} parent=5 // pred_check
        %p1160 = pneg %p1159
      $region58: #{tpu_custom_call.1} parent=5 // pred_check_branch
        %1162 = sbr.rel (%p1160) target = $region60
      $region59: #{tpu_custom_call.1} parent=5 // pred_region
        %s1163 = ssub.s32 %s18, 2
        // Predicated region
        $region61: #{tpu_custom_call.1} parent=59 // pred_check
          %p1164 = pneg %p157
        $region62: #{tpu_custom_call.1} parent=59 // pred_check_branch
          %1166 = sbr.rel (%p1164) target = $region64
        $region63: #{tpu_custom_call.1} parent=59 // pred_region
          %s1167 = sand.u32 %s142, 1
          %s1168 = scalar_lea.sflag [#allocation4], %s1167
          %s1169 = sand.u32 %s142, 1
          %s1170 = smul.addr %s1169, 16
          %s1171 = scalar_lea.vmem [#allocation8], %s1170
          %1172 = dma.done %s1168, 256
        $region64: #{tpu_custom_call.1} parent=59 // pred_fallthru
          _
      $region60: #{tpu_custom_call.1} parent=5 // pred_fallthru
        _
    $region6: #{tpu_custom_call.1} parent=1 // loop_footer
      %s22 = sadd.s32 1, %s18
    $region7: #{tpu_custom_call.1} parent=1 // loop_footer_branch
      %17 = sbr.rel target = $region3
    $region8: #{tpu_custom_call.1} parent=1 // loop_exit
      _
    %1173 = vsyncpa [#allocation3], 1
    %s1174 = scalar_lea.sflag [#allocation3], 1
    %1175 = vsyncpa %s1174, 1
    %1176 = vsyncpa [#allocation6], 1
    %1177 = vsyncpa [#allocation4], 1
    %s1178 = scalar_lea.sflag [#allocation4], 1
    %1179 = vsyncpa %s1178, 1

</llo_original>
